<compile_context>
chip_gen: v6e
topology: v6e:2x2x1
jax: 0.10.0
libtpu: 0.0.40
codegen_flags: <defaults>
</compile_context>

<pallas_src>
import functools
import types

import jax
import jax.numpy as jnp
from jax.experimental import pallas as pl
from jax.experimental.pallas import tpu as pltpu


# Below this total size a fused XLA reduction beats the pallas_call overhead.
_PALLAS_MIN_BYTES = 256 * 1024

# Per-input-buffer VMEM budget (pipeline double-buffers it).
_BLOCK_BYTES_BUDGET = 8 * 1024 * 1024

_VMEM_LIMIT_BYTES = 32 * 1024 * 1024


def _avg_consensus_kernel(x_ref, o_ref, *, inv_t):
    # x_ref: (Bb, T, Cb) block; o_ref: (Bb, 1, Cb) block.
    # Accumulate in f32 (no materialized f32 copy of the tile), scale by a
    # static 1/T, cast once on store.
    s = jnp.sum(x_ref[...], axis=1, keepdims=True, dtype=jnp.float32)
    o_ref[...] = (s * inv_t).astype(o_ref.dtype)


def avg_consensus(x):
    """Mean over dim=1 with keepdim=True, computed in a Pallas kernel."""
    B, T, C = x.shape
    itemsize = jnp.dtype(x.dtype).itemsize
    row_bytes = T * C * itemsize

    if row_bytes <= _BLOCK_BYTES_BUDGET:
        # Whole class axis in one block (full-extent dim => (8,128) rule ok,
        # even if C is not a multiple of 128).
        Cb = C
        c_grid = 1
    else:
        # Single row too big for VMEM: tile classes in lane-aligned chunks.
        Cb = max(128, (_BLOCK_BYTES_BUDGET // (T * itemsize)) // 128 * 128)
        Cb = min(Cb, pl.cdiv(C, 128) * 128)
        c_grid = pl.cdiv(C, Cb)

    block_row_bytes = T * Cb * itemsize
    Bb = max(1, min(B, _BLOCK_BYTES_BUDGET // block_row_bytes))
    # Keep >= 2 grid steps when possible so both v7x TensorCores get work.
    if B > 1 and c_grid == 1:
        Bb = min(Bb, pl.cdiv(B, 2))
    b_grid = pl.cdiv(B, Bb)

    kernel = functools.partial(_avg_consensus_kernel, inv_t=1.0 / float(T))

    return pl.pallas_call(
        kernel,
        out_shape=jax.ShapeDtypeStruct((B, 1, C), x.dtype),
        grid=(b_grid, c_grid),
        in_specs=[pl.BlockSpec((Bb, T, Cb), lambda b, c: (b, 0, c))],
        out_specs=pl.BlockSpec((Bb, 1, Cb), lambda b, c: (b, 0, c)),
        compiler_params=pltpu.CompilerParams(
            dimension_semantics=("parallel", "parallel"),
            vmem_limit_bytes=_VMEM_LIMIT_BYTES),
    )(x)


def _mean_over_segments(x):
    """Dispatch: Pallas kernel for big tensors, fused XLA mean for tiny ones."""
    nbytes = x.size * jnp.dtype(x.dtype).itemsize
    if nbytes < _PALLAS_MIN_BYTES:
        return jnp.mean(x, axis=1, keepdims=True)
    return avg_consensus(x)


class ConsensusModule:
    """JAX/Pallas port of the PyTorch ConsensusModule forward pass."""

    def __init__(self, consensus_type, dim=1, args=None):
        self.consensus_type = (
            consensus_type if consensus_type != 'rnn' else 'identity')
        self.dim = dim
        self.args = args

    def __call__(self, x, lite_input=None):
        if self.consensus_type == 'scsampler':
            # TODO(synk): top-k scoring + data-dependent segment gather stays
            # in XLA (no clean static Pallas tiling); the final segment mean
            # reuses the Pallas kernel when the gathered tensor is large.
            if lite_input is None:
                lite_input = x
            scores = jnp.max(jax.lax.stop_gradient(lite_input), axis=2)  # (B, T)
            _, ind = jax.lax.top_k(scores, self.args.top_k)              # (B, k)
            gathered = jnp.take_along_axis(x, ind[:, :, None], axis=1)   # (B, k, C)
            output = _mean_over_segments(gathered)
            if getattr(self.args, 'real_scsampler', False):
                return output, ind
            return output
        if self.consensus_type == 'avg':
            assert self.dim == 1, "kernel implemented for dim=1 (segments axis)"
            return _mean_over_segments(x)
        if self.consensus_type == 'identity':
            return x
        return None


if __name__ == "__main__":
    key = jax.random.PRNGKey(0)
    B, T, C = 4, 8, 200  # batch, segments, classes (C not a multiple of 128)
    x = jax.random.normal(key, (B, T, C), dtype=jnp.float32)
    ref = jnp.mean(x.astype(jnp.float32), axis=1, keepdims=True)

    # --- Pallas kernel path (called directly to exercise the kernel) ---
    out = jax.block_until_ready(avg_consensus(x))
    assert out.shape == (B, 1, C)
    assert jnp.allclose(out, ref, atol=1e-5, rtol=1e-5)

    # --- Module 'avg' path (tiny input -> small-problem fallback) ---
    mod_avg = ConsensusModule('avg', dim=1)
    out_mod = jax.block_until_ready(mod_avg(x))
    assert out_mod.shape == (B, 1, C)
    assert jnp.allclose(out_mod, ref, atol=1e-5, rtol=1e-5)

    # --- 'identity' (and 'rnn' -> 'identity') consensus — pass-through ---
    mod_id = ConsensusModule('rnn', dim=1)
    out_id = jax.block_until_ready(mod_id(x))
    assert out_id.shape == x.shape
    assert jnp.allclose(out_id, x)

    # --- 'scsampler' consensus (top-k segments, then mean) ---
    args = types.SimpleNamespace(top_k=3, real_scsampler=False)
    mod_sc = ConsensusModule('scsampler', dim=1, args=args)
    out_sc = jax.block_until_ready(mod_sc(x))
    _, ind_ref = jax.lax.top_k(jnp.max(x, axis=2), args.top_k)
    ref_sc = jnp.mean(
        jnp.take_along_axis(x, ind_ref[:, :, None], axis=1),
        axis=1, keepdims=True)
    assert out_sc.shape == (B, 1, C)
    assert jnp.allclose(out_sc, ref_sc, atol=1e-5, rtol=1e-5)

    print("KERNEL_OK")
</pallas_src>

<mosaic_0001>
module attributes {stable_mosaic.version = 11 : i64} {
  func.func @_avg_consensus_kernel(%arg0: i32, %arg1: i32, %arg2: memref<2x8x200xf32, #tpu.memory_space<vmem>>, %arg3: memref<2x1x200xf32, #tpu.memory_space<vmem>>) attributes {dimension_semantics = [#tpu.dimension_semantics<parallel>, #tpu.dimension_semantics<parallel>], iteration_bounds = array<i64: 2, 1>, scalar_prefetch = 0 : i64, scratch_operands = 0 : i64, tpu.core_type = #tpu.core_type<tc>, window_params = [{transform_indices = @transform_0, window_bounds = array<i64: 2, 8, 200>}, {transform_indices = @transform_1, window_bounds = array<i64: 2, 1, 200>}]} {
    %c0 = arith.constant 0 : index
    %c0_0 = arith.constant 0 : index
    %c0_1 = arith.constant 0 : index
    %0 = vector.load %arg2[%c0, %c0_0, %c0_1] : memref<2x8x200xf32, #tpu.memory_space<vmem>>, vector<2x8x200xf32>
    %cst = arith.constant dense<0.000000e+00> : vector<2x200xf32>
    %1 = vector.multi_reduction <add>, %0, %cst [1] : vector<2x8x200xf32> to vector<2x200xf32>
    %2 = vector.shape_cast %1 : vector<2x200xf32> to vector<2x1x200xf32>
    %cst_2 = arith.constant 1.250000e-01 : f32
    %3 = vector.broadcast %cst_2 : f32 to vector<2x1x200xf32>
    %4 = arith.mulf %2, %3 : vector<2x1x200xf32>
    %c0_3 = arith.constant 0 : index
    %c0_4 = arith.constant 0 : index
    %c0_5 = arith.constant 0 : index
    %5 = vector.load %arg3[%c0_3, %c0_4, %c0_5] : memref<2x1x200xf32, #tpu.memory_space<vmem>>, vector<2x1x200xf32>
    tpu.vector_store %arg3[%c0_3, %c0_4, %c0_5], %4 {strides = array<i32>} : memref<2x1x200xf32, #tpu.memory_space<vmem>>, vector<2x1x200xf32>,
    return
  }
  func.func @transform_0(%arg0: i32, %arg1: i32) -> (i32, i32, i32) {
    %c0_i32 = arith.constant 0 : i32
    %c0_i32_0 = arith.constant 0 : i32
    return %arg0, %c0_i32, %arg1 : i32, i32, i32
  }
  func.func @transform_1(%arg0: i32, %arg1: i32) -> (i32, i32, i32) {
    %c0_i32 = arith.constant 0 : i32
    %c0_i32_0 = arith.constant 0 : i32
    return %arg0, %c0_i32, %arg1 : i32, i32, i32
  }
}

</mosaic_0001>

<llo_original>
// kernel: tpu_custom_call.1
$region0: #{tpu_custom_call.1}
  #allocation0 [shape = 'u32[]', space=smem, size = 0x4, offset = 0x4, fixed_abs, tag = 'smem constant byte address 0x4 - core index']
  #allocation1 [shape = 'u32[144,128]{1,0:T(1,128)}', space=vmem, size = 0x12000, scoped, tag = 'internal scratch']
  %s0 = inlined_call_operand.hbm [shape: f32[4,8,200], index: 0, kind: input, shape index: {}]
  %s1 = inlined_call_operand.hbm [shape: f32[4,1,200], index: 1, kind: output, shape index: {}]
  %s2 = sld [smem:[#allocation0]]
  $region41: #{tpu_custom_call.1} parent=0
    _
  %s4 = ssub.s32 1, %s2
  %s5 = scalar_select 0, %s4, %s2
  $region1: #{tpu_custom_call.1} parent=0
    #allocation2 [shape = 'u8[32768]{0}', space=vmem, size = 0x8000, scoped, tag = 'input window, operand 0']
    #allocation3 [shape = 's32[2]{0}', space=sflag, size = 0x8, scoped, tag = 'scoped memory for tpu_custom_call.1']
    #allocation4 [shape = 's32[2]{0}', space=sflag, size = 0x8, scoped, tag = 'scoped memory for tpu_custom_call.1']
    #allocation5 [shape = 'u8[4096]{0}', space=vmem, size = 0x1000, scoped, tag = 'output window, operand 0']
    %6 = vsyncpa [#allocation3], 0
    %s7 = scalar_lea.sflag [#allocation3], 1
    %8 = vsyncpa %s7, 0
    %9 = vsyncpa [#allocation4], 0
    %s10 = scalar_lea.sflag [#allocation4], 1
    %11 = vsyncpa %s10, 0
    loop: start=0, step=1, limit=4
    $region2: #{tpu_custom_call.1} parent=1 // loop_pre_header
      _
    $region3: #{tpu_custom_call.1} parent=1 // loop_header
      %s13 = sphi 0, %s17
      %p14 = scmp.ge.s32.totalorder %s13, 4
      %s20 = sphi 0, %s32
      %s21 = sphi 0, %s28
      %s22 = sphi 0, %s20
      %s23 = sphi 0, %s21
      %s24 = sphi 0, %s22
      %s25 = sphi 0, %s23
      %s37 = sphi 0, %s39
      %s40 = sphi 0, %s37
      %s41 = sphi 0, %s40
      %s57 = sphi 0, %s41
      %s65 = sphi 0, %s67
      %s68 = sphi 0, %s65
      %s69 = sphi 0, %s68
      %s85 = sphi 0, %s69
    $region4: #{tpu_custom_call.1} parent=1 // loop_header_branch
      %16 = sbr.rel (%p14) target = $region8
    $region5: #{tpu_custom_call.1} parent=1 // loop_body
      %s18 = ssub.s32 %s13, 1
      %s19 = ssub.s32 %s13, 2
      %s26 = sadd.s32 1, %s21
      %p27 = scmp.ge.s32.totalorder %s26, 1
      %s28 = scalar_select %p27, 0, %s26
      %s29 = sadd.s32 1, %s20
      %s30 = scalar_select %p27, %s29, %s20
      %p31 = scmp.ge.s32.totalorder %s30, 2
      %s32 = scalar_select %p31, 0, %s30
      %s33 = ssub.s32 %s20, %s32
      %s34 = ssub.s32 %s21, %s28
      %s35 = sor.u32 %s33, %s34
      %p36 = scmp.eq.s32.totalorder %s35, 0
      %s38 = sadd.s32 %s37, 1
      %s39 = scalar_select %p36, %s37, %s38
      %p42 = pneg %p36
      %p43 = scmp.eq.s32.totalorder %s13, 1
      %p44 = por %p42, %p43
      %p45 = scmp.ne.s32.totalorder %s37, %s40
      %p46 = scmp.eq.s32.totalorder %s13, 0
      %p47 = por %p45, %p46
      %p48 = scmp.ne.s32.totalorder %s37, %s40
      %p49 = scmp.eq.s32.totalorder %s18, 1
      %p50 = por %p48, %p49
      %p51 = scmp.ne.s32.totalorder %s40, %s41
      %p52 = scmp.eq.s32.totalorder %s18, 0
      %p53 = por %p51, %p52
      %p54 = scmp.ne.s32.totalorder %s40, %s41
      %p55 = scmp.eq.s32.totalorder %s19, 1
      %p56 = por %p54, %p55
      %p58 = scmp.ne.s32.totalorder %s41, %s57
      %p59 = scmp.eq.s32.totalorder %s19, 0
      %p60 = por %p58, %p59
      %s61 = ssub.s32 %s20, %s32
      %s62 = ssub.s32 %s21, %s28
      %s63 = sor.u32 %s61, %s62
      %p64 = scmp.eq.s32.totalorder %s63, 0
      %s66 = sadd.s32 %s65, 1
      %s67 = scalar_select %p64, %s65, %s66
      %p70 = pneg %p64
      %p71 = scmp.eq.s32.totalorder %s13, 1
      %p72 = por %p70, %p71
      %p73 = scmp.ne.s32.totalorder %s65, %s68
      %p74 = scmp.eq.s32.totalorder %s13, 0
      %p75 = por %p73, %p74
      %p76 = scmp.ne.s32.totalorder %s65, %s68
      %p77 = scmp.eq.s32.totalorder %s18, 1
      %p78 = por %p76, %p77
      %p79 = scmp.ne.s32.totalorder %s68, %s69
      %p80 = scmp.eq.s32.totalorder %s18, 0
      %p81 = por %p79, %p80
      %p82 = scmp.ne.s32.totalorder %s68, %s69
      %p83 = scmp.eq.s32.totalorder %s19, 1
      %p84 = por %p82, %p83
      %p86 = scmp.ne.s32.totalorder %s69, %s85
      %p87 = scmp.eq.s32.totalorder %s19, 0
      %p88 = por %p86, %p87
      %p89 = scmp.le.s32.totalorder 1, %s13
      %p90 = scmp.lt.s32.totalorder %s13, 3
      %p91 = pnand %p89, %p90
      %p92 = pneg %p91
      // Predicated region
      $region9: #{tpu_custom_call.1} parent=5 // pred_check
        _
      $region10: #{tpu_custom_call.1} parent=5 // pred_check_branch
        %94 = sbr.rel (%p91) target = $region12
      $region11: #{tpu_custom_call.1} parent=5 // pred_region
        %s95 = ssub.s32 %s13, 1
      $region12: #{tpu_custom_call.1} parent=5 // pred_fallthru
        _
      %p96 = scmp.lt.s32.totalorder %s13, 2
      // Predicated region
      $region13: #{tpu_custom_call.1} parent=5 // pred_check
        %p97 = pneg %p96
      $region14: #{tpu_custom_call.1} parent=5 // pred_check_branch
        %99 = sbr.rel (%p97) target = $region16
      $region15: #{tpu_custom_call.1} parent=5 // pred_region
        // Predicated region
        $region17: #{tpu_custom_call.1} parent=15 // pred_check
          %p100 = pneg %p47
        $region18: #{tpu_custom_call.1} parent=15 // pred_check_branch
          %102 = sbr.rel (%p100) target = $region20
        $region19: #{tpu_custom_call.1} parent=15 // pred_region
          %s103 = sand.u32 %s37, 1
          %s104 = scalar_lea.sflag [#allocation3], %s103
          %s105 = sand.u32 %s37, 1
          %s106 = smul.addr %s105, 32
          %s107 = scalar_lea.vmem [#allocation2], %s106
          %s108 = smul.u32 2, %s20
          %s109 = smul.u32 2, %s21
          %s111 = ssub.s32 512, 512
          %112 = vsyncadd %s104, %s111
          %s113 = smul.addr %s108, 2
          %s114 = sadd.s32 %s109, %s113
          %s115 = smul.addr %s114, 128
          %s116 = scalar_lea.hbm %s0, %s115
          %s117 = sshll.u32 %s107, 4
          %s118 = int_to_ptr.vmem [resolvable:$true] %s117
          %123 = dma.hbm_to_vmem [thread:$0]  %s116, 512, %s118, %s104, 256, 256, 16
        $region20: #{tpu_custom_call.1} parent=15 // pred_fallthru
          _
      $region16: #{tpu_custom_call.1} parent=5 // pred_fallthru
        _
      %p124 = scmp.le.s32.totalorder 1, %s13
      %p125 = scmp.lt.s32.totalorder %s13, 3
      %p126 = pnand %p124, %p125
      %p127 = pneg %p126
      // Predicated region
      $region21: #{tpu_custom_call.1} parent=5 // pred_check
        _
      $region22: #{tpu_custom_call.1} parent=5 // pred_check_branch
        %129 = sbr.rel (%p126) target = $region24
      $region23: #{tpu_custom_call.1} parent=5 // pred_region
        %s130 = ssub.s32 %s13, 1
        %s131 = sand.u32 %s40, 1
        %s132 = scalar_lea.sflag [#allocation3], %s131
        %s133 = sand.u32 %s40, 1
        %s134 = smul.addr %s133, 32
        %s135 = scalar_lea.vmem [#allocation2], %s134
        // Predicated region
        $region25: #{tpu_custom_call.1} parent=23 // pred_check
          %p136 = pneg %p53
        $region26: #{tpu_custom_call.1} parent=23 // pred_check_branch
          %138 = sbr.rel (%p136) target = $region28
        $region27: #{tpu_custom_call.1} parent=23 // pred_region
          %139 = dma.done %s132, 512
        $region28: #{tpu_custom_call.1} parent=23 // pred_fallthru
          _
        %s140 = sand.u32 %s40, 1
        %s141 = scalar_lea.sflag [#allocation3], %s140
        %s142 = sand.u32 %s40, 1
        %s143 = smul.addr %s142, 32
        %s144 = scalar_lea.vmem [#allocation2], %s143
        %p145 = pneg %p53
        %p146 = pneg %p50
        %p147 = pneg %p81
        %p148 = pneg %p78
        %s149 = sand.u32 %s68, 1
        %s150 = scalar_lea.sflag [#allocation4], %s149
        %s151 = sand.u32 %s68, 1
        %s152 = smul.addr %s151, 4
        %s153 = scalar_lea.vmem [#allocation5], %s152
        %s154 = smul.u32 2, %s22
        %s155 = smul.u32 2, %s23
        %s156 = smul.u32 2, %s22
        %s157 = smul.u32 2, %s23
        %v158 = vld [vmem:[%s135] sm:$0xff]
        %v159 = vld [vmem:[%s135 + $0x8] sm:$0xff]
        %v160 = vld [vmem:[%s135 + $0x10] sm:$0xff]
        %v161 = vld [vmem:[%s135 + $0x18] sm:$0xff]
        %v162 = vrot.slane %v158, 4
        %v163 = vadd.f32 %v158, %v162
        %v164 = vrot.slane %v163, 2
        %v165 = vadd.f32 %v163, %v164
        %v166 = vrot.slane %v165, 1
        %v167 = vadd.f32 %v165, %v166
        %vm168 = vcmask 588800
        %v169 = vsel %vm168, %v159, 0.0
        %v170 = vrot.slane %v169, 4
        %v171 = vadd.f32 %v169, %v170
        %v172 = vrot.slane %v171, 2
        %v173 = vadd.f32 %v171, %v172
        %v174 = vrot.slane %v173, 1
        %v175 = vadd.f32 %v173, %v174
        %v176 = vrot.slane %v160, 4
        %v177 = vadd.f32 %v160, %v176
        %v178 = vrot.slane %v177, 2
        %v179 = vadd.f32 %v177, %v178
        %v180 = vrot.slane %v179, 1
        %v181 = vadd.f32 %v179, %v180
        %v182 = vsel %vm168, %v161, 0.0
        %v183 = vrot.slane %v182, 4
        %v184 = vadd.f32 %v182, %v183
        %v185 = vrot.slane %v184, 2
        %v186 = vadd.f32 %v184, %v185
        %v187 = vrot.slane %v186, 1
        %v188 = vadd.f32 %v186, %v187
        %v189 = vmul.f32 %v167, 0.125
        %v190 = vmul.f32 %v175, 0.125
        %v191 = vmul.f32 %v181, 0.125
        %v192 = vmul.f32 %v188, 0.125
        %v197 = vcombine.low %v189, %v190
        %v199 = vunpack.c.l.s4 1966171168
        %v200 = vunpack.c.0.s8 %v199
        %v201 = vlaneseq
        %v202 = vshrl.u32 %v201, 7
        %v203 = vsub.s32 %v200, %v202
        %v204 = vrot.slane %v197, %v203
        %v206 = vunpack.c.l.s4 1966171168
        %v207 = vunpack.c.0.s8 %v206
        %v208 = vlaneseq
        %v209 = vshrl.u32 %v208, 7
        %v210 = vsub.s32 %v207, %v209
        %v211 = vrot.slane %v204, %v210
        %v212 = vcombine.low %v191, %v192
        %v214 = vunpack.c.l.s4 1966171168
        %v215 = vunpack.c.0.s8 %v214
        %v216 = vlaneseq
        %v217 = vshrl.u32 %v216, 7
        %v218 = vsub.s32 %v215, %v217
        %v219 = vrot.slane %v212, %v218
        %v221 = vunpack.c.l.s4 1966171168
        %v222 = vunpack.c.0.s8 %v221
        %v223 = vlaneseq
        %v224 = vshrl.u32 %v223, 7
        %v225 = vsub.s32 %v222, %v224
        %v226 = vrot.slane %v219, %v225
        %v229 = vlaneseq
        %vm230 = vcmp.ge.s32.totalorder %v229, 0
        %vm231 = vcmp.lt.s32.totalorder %v229, 200
        %vm232 = vmand %vm230, %vm231
        %233 = vst.msk [vmem:[%s153] sm:$0x3] %vm232, %v211
        %234 = vst.msk [vmem:[%s153 + $0x2] sm:$0x3] %vm232, %v226
        %s235 = sand.u32 %s68, 1
        %s236 = scalar_lea.sflag [#allocation4], %s235
        %s237 = sand.u32 %s68, 1
        %s238 = smul.addr %s237, 4
        %s239 = scalar_lea.vmem [#allocation5], %s238
        // Predicated region
        $region29: #{tpu_custom_call.1} parent=23 // pred_check
          %p240 = pneg %p78
        $region30: #{tpu_custom_call.1} parent=23 // pred_check_branch
          %242 = sbr.rel (%p240) target = $region32
        $region31: #{tpu_custom_call.1} parent=23 // pred_region
          %s243 = smul.u32 2, %s22
          %s244 = smul.u32 2, %s23
          %s246 = ssub.s32 64, 64
          %247 = vsyncadd %s236, %s246
          %s248 = smul.addr %s243, 2
          %s249 = sadd.s32 %s244, %s248
          %s250 = smul.addr %s249, 16
          %s251 = scalar_lea.hbm %s1, %s250
          %s252 = sshll.u32 %s239, 4
          %s253 = int_to_ptr.vmem [resolvable:$true] %s252
          %258 = dma.vmem_to_hbm [thread:$0]  %s253, 64, %s251, %s236, 32, 32, 2
        $region32: #{tpu_custom_call.1} parent=23 // pred_fallthru
          _
      $region24: #{tpu_custom_call.1} parent=5 // pred_fallthru
        _
      %p259 = scmp.le.s32.totalorder 2, %s13
      // Predicated region
      $region33: #{tpu_custom_call.1} parent=5 // pred_check
        %p260 = pneg %p259
      $region34: #{tpu_custom_call.1} parent=5 // pred_check_branch
        %262 = sbr.rel (%p260) target = $region36
      $region35: #{tpu_custom_call.1} parent=5 // pred_region
        %s263 = ssub.s32 %s13, 2
        // Predicated region
        $region37: #{tpu_custom_call.1} parent=35 // pred_check
          %p264 = pneg %p84
        $region38: #{tpu_custom_call.1} parent=35 // pred_check_branch
          %266 = sbr.rel (%p264) target = $region40
        $region39: #{tpu_custom_call.1} parent=35 // pred_region
          %s267 = sand.u32 %s69, 1
          %s268 = scalar_lea.sflag [#allocation4], %s267
          %s269 = sand.u32 %s69, 1
          %s270 = smul.addr %s269, 4
          %s271 = scalar_lea.vmem [#allocation5], %s270
          %272 = dma.done %s268, 64
        $region40: #{tpu_custom_call.1} parent=35 // pred_fallthru
          _
      $region36: #{tpu_custom_call.1} parent=5 // pred_fallthru
        _
    $region6: #{tpu_custom_call.1} parent=1 // loop_footer
      %s17 = sadd.s32 1, %s13
    $region7: #{tpu_custom_call.1} parent=1 // loop_footer_branch
      %12 = sbr.rel target = $region3
    $region8: #{tpu_custom_call.1} parent=1 // loop_exit
      _
    %273 = vsyncpa [#allocation3], 1
    %s274 = scalar_lea.sflag [#allocation3], 1
    %275 = vsyncpa %s274, 1
    %276 = vsyncpa [#allocation4], 1
    %s277 = scalar_lea.sflag [#allocation4], 1
    %278 = vsyncpa %s277, 1

</llo_original>
